<compile_context>
chip_gen: v5e
topology: v5e:2x2
jax: 0.10.0
libtpu: 0.0.40
codegen_flags: <defaults>
</compile_context>

<pallas_src>
import functools

import jax
import jax.numpy as jnp
from jax import lax
from jax.experimental import pallas as pl
from jax.experimental.pallas import tpu as pltpu

EPS = 1e-5


def _default_rows_target():
    # Generation-aware M budget: ~512 flattened rows is safe on a 64 MiB-VMEM
    # part (v7x); 128 MiB parts (v5e/v6e) can push toward ~1024.
    try:
        vmem = pltpu.get_tpu_info().vmem_capacity_bytes
        return 1024 if vmem >= (100 << 20) else 512
    except Exception:
        return 512


def _largest_divisor_leq(n, cap):
    cap = max(1, min(n, cap))
    for d in range(cap, 0, -1):
        if n % d == 0:
            return d
    return 1


def _pick_row_tile(ho, wo, target_rows):
    """Largest th dividing Ho with th*Wo <= target_rows and an 8-aligned
    flattened store dim; falls back to full Ho (full-dim blocks always legal)."""
    target_th = max(1, min(ho, target_rows // max(wo, 1)))
    for th in range(target_th, 0, -1):
        if ho % th == 0 and (th * wo) % 8 == 0:
            return th
    return ho


def _pick_row_chunk(th, wo, max_chunks=4, min_m=128):
    """Rows per intra-kernel M-chunk: split th into up to max_chunks pieces as
    long as each keeps >= min_m flattened rows and stays 8-aligned."""
    best = th
    for n in range(2, max(max_chunks, 1) + 1):
        if th % n == 0:
            rc = th // n
            if (rc * wo) % 8 == 0 and rc * wo >= min_m:
                best = rc
    return best


def _convdw_kernel(x_ref, wdw_ref, wpw_ref, b1_ref, b2_ref, o_ref, *,
                   stride, nb, th, wo, row_chunk):
    # x_ref  : (nb, s*s, Hpp, Wpp, Cin) phase-decomposed zero-padded input;
    #          block index is constant along the row-tile grid axis, so it is
    #          DMA'd once per batch group and revisited for every row tile.
    # wdw_ref: (9, Cin)        depthwise 3x3 weights, tap-major, BN1 scale folded
    # wpw_ref: (Cin, Cout_pad) pointwise weights, BN2 scale folded (f32 or bf16)
    # b1_ref : (1, Cin)        folded BN1 bias (f32)
    # b2_ref : (1, Cout_pad)   folded BN2 bias (f32)
    # o_ref  : (nb, th*wo, Cout_pad) lane-dense flattened output tile
    cin = x_ref.shape[-1]
    j = pl.program_id(1)
    row0 = pl.multiple_of(j * th, th)        # first output row of this tile

    # Constant operands loaded once per grid step, hoisted above all chunks.
    wdw = wdw_ref[...]                       # (9, Cin)
    wpw = wpw_ref[...]                       # (Cin, Cout_pad)
    b1 = b1_ref[0]                           # (Cin,)
    b2 = b2_ref[0]                           # (Cout_pad,)

    n_row_chunks = th // row_chunk
    # Fully unrolled (batch, row-chunk) loop: chunk k+1's 9-tap VPU work is
    # independent of chunk k's MXU matmul, so VALU and vmatmul pushes overlap.
    for b in range(nb):
        for c in range(n_row_chunks):
            rs = c * row_chunk
            # ---- depthwise 3x3: 9 contiguous-window multiply-accumulates ----
            # xph[ph*s+pw, r, c] == x_padded[r*s+ph, c*s+pw], so tap (kh, kw)
            # is a contiguous window of phase (kh % s, kw % s).
            acc = None
            for kh in range(3):
                for kw in range(3):
                    k = 3 * kh + kw
                    phase = (kh % stride) * stride + (kw % stride)
                    tap = x_ref[b, phase,
                                pl.ds(row0 + rs + kh // stride, row_chunk),
                                pl.ds(kw // stride, wo), :]
                    # Accumulate in f32 even if the resident image is bf16.
                    contrib = tap.astype(jnp.float32) * wdw[k]
                    acc = contrib if acc is None else acc + contrib

            # ---- BN1 (bias only; scale folded) + ReLU ----
            y = jnp.maximum(acc + b1, 0.0)

            # ---- pointwise 1x1 conv as MXU matmul over (row_chunk*wo, Cin) ----
            y2 = jnp.dot(y.reshape(row_chunk * wo, cin).astype(wpw.dtype),
                         wpw, preferred_element_type=jnp.float32)

            # ---- BN2 (bias only) + ReLU, lane-dense store ----
            o_ref[b, pl.ds(rs * wo, row_chunk * wo), :] = jnp.maximum(
                y2 + b2, 0.0).astype(o_ref.dtype)


def conv_dw_forward(x_nchw, params, stride, *, rows_target=None, use_bf16=False):
    """ConvDW forward. x_nchw: (N, Cin, H, W). Returns (N, Cout, Ho, Wo).

    use_bf16=True is the production path (bf16 image / MXU operands / output,
    f32 accumulation); default False keeps the f32 path for tight testing.
    """
    (wdw, wpw, g1, b1, m1, v1, g2, b2, m2, v2) = params
    s = int(stride)
    N, Cin, H, W = x_nchw.shape
    Cout = wpw.shape[1]
    Ho = (H + 2 - 3) // s + 1
    Wo = (W + 2 - 3) // s + 1
    if rows_target is None:
        rows_target = _default_rows_target()

    # ---- single fused relayout: pad once (conv pad=1, plus bottom/right so
    #      padded dims divide s) and phase-decompose in the same pass.
    #      xph[n, ph*s+pw, r, c, ci] == x_padded[n, r*s+ph, c*s+pw, ci] (NHWC).
    Hp, Wp = H + 2, W + 2
    He, We = (-Hp) % s, (-Wp) % s
    Hpp, Wpp = (Hp + He) // s, (Wp + We) // s
    xp = jnp.pad(x_nchw, ((0, 0), (0, 0), (1, 1 + He), (1, 1 + We)))
    xph = xp.reshape(N, Cin, Hpp, s, Wpp, s).transpose(0, 3, 5, 2, 4, 1)
    xph = xph.reshape(N, s * s, Hpp, Wpp, Cin)
    if use_bf16:
        xph = xph.astype(jnp.bfloat16)   # halves DMA + VMEM residency
    # TODO(synk): accept/emit NHWC directly (and do the stride-2 phase split
    # in-kernel via strided ref slices) to drop the remaining wrapper-side
    # full-HBM relayout passes when the surrounding model is channels-last.

    # ---- fold eval-mode BN scales into the conv weights; keep only biases ----
    scale1 = g1 / jnp.sqrt(v1 + EPS)
    bias1 = (b1 - m1 * scale1).reshape(1, Cin).astype(jnp.float32)
    scale2 = g2 / jnp.sqrt(v2 + EPS)
    bias2 = b2 - m2 * scale2
    wdw_f = (wdw * scale1[None, None, :]).reshape(9, Cin).astype(jnp.float32)
    wpw_f = wpw * scale2[None, :]

    # ---- lane-dense output: pad Cout up to a multiple of 128 (unmasked vst) ----
    Cout_pad = ((Cout + 127) // 128) * 128
    wpw_f = jnp.pad(wpw_f, ((0, 0), (0, Cout_pad - Cout)))
    bias2 = jnp.pad(bias2, (0, Cout_pad - Cout)).reshape(1, Cout_pad).astype(jnp.float32)
    # bf16 MXU operands issue several times faster on all generations; explicit
    # opt-in (per review) so the f32 unit-test tolerance stays tight by default.
    wpw_f = wpw_f.astype(jnp.bfloat16 if use_bf16 else jnp.float32)
    out_dtype = jnp.bfloat16 if use_bf16 else x_nchw.dtype

    # ---- tiling: target th*Wo ~ rows_target flattened rows; if a whole image
    #      is smaller than that, fold a group of nb batch elements per step. ----
    rows_per_img = Ho * Wo
    if rows_per_img < rows_target and N > 1:
        nb = _largest_divisor_leq(N, min(8, max(1, rows_target // rows_per_img)))
        th = Ho
    else:
        nb = 1
        th = _pick_row_tile(Ho, Wo, rows_target)
    n_row_tiles = Ho // th
    row_chunk = _pick_row_chunk(th, Wo, max_chunks=max(1, 8 // nb))

    # ---- explicit VMEM budget: image + output blocks are double-buffered by
    #      the pipeline; keeps v7x (64 MiB physical) from forcing a tiny tile.
    x_bytes = nb * s * s * Hpp * Wpp * Cin * jnp.dtype(xph.dtype).itemsize
    o_bytes = nb * th * Wo * Cout_pad * jnp.dtype(out_dtype).itemsize
    w_bytes = (9 * Cin + Cin * Cout_pad + Cin + Cout_pad) * 4
    vmem_limit = int(min(max(3 * (x_bytes + o_bytes + w_bytes) + (8 << 20),
                             32 << 20), 100 << 20))

    kernel = functools.partial(_convdw_kernel, stride=s, nb=nb, th=th, wo=Wo,
                               row_chunk=row_chunk)

    # TODO(synk): on v7x, single-buffer the never-changing operands
    # (pipeline_mode=pl.Buffered(1) on wdw/wpw/b1/b2) to reclaim VMEM headroom;
    # left off here because buffer_count=1 support varies across JAX versions.
    out_flat = pl.pallas_call(
        kernel,
        out_shape=jax.ShapeDtypeStruct((N, Ho * Wo, Cout_pad), out_dtype),
        grid=(N // nb, n_row_tiles),
        in_specs=[
            # Full phase-decomposed image group; block index does not depend on
            # j, so it is fetched once per batch group (no re-DMA per row tile).
            pl.BlockSpec((nb, s * s, Hpp, Wpp, Cin), lambda n, j: (n, 0, 0, 0, 0)),
            pl.BlockSpec((9, Cin), lambda n, j: (0, 0)),
            pl.BlockSpec((Cin, Cout_pad), lambda n, j: (0, 0)),
            pl.BlockSpec((1, Cin), lambda n, j: (0, 0)),
            pl.BlockSpec((1, Cout_pad), lambda n, j: (0, 0)),
        ],
        out_specs=pl.BlockSpec((nb, th * Wo, Cout_pad), lambda n, j: (n, j, 0)),
        compiler_params=pltpu.CompilerParams(
            dimension_semantics=("parallel", "parallel"),
            vmem_limit_bytes=vmem_limit),
    )(xph, wdw_f, wpw_f, bias1, bias2)

    out = out_flat[:, :, :Cout].reshape(N, Ho, Wo, Cout)
    return jnp.transpose(out, (0, 3, 1, 2))             # NHWC -> NCHW


def conv_dw_reference(x_nchw, params, stride):
    """Pure-JAX reference matching PyTorch ConvDW (eval-mode BN)."""
    (wdw, wpw, g1, b1, m1, v1, g2, b2, m2, v2) = params
    Cin = x_nchw.shape[1]
    w1 = jnp.transpose(wdw, (2, 0, 1))[:, None, :, :]          # (Cin, 1, 3, 3)
    y = lax.conv_general_dilated(
        x_nchw, w1, (stride, stride), ((1, 1), (1, 1)),
        feature_group_count=Cin,
        dimension_numbers=("NCHW", "OIHW", "NCHW"))
    y = (y - m1[None, :, None, None]) / jnp.sqrt(v1 + EPS)[None, :, None, None]
    y = y * g1[None, :, None, None] + b1[None, :, None, None]
    y = jnp.maximum(y, 0.0)
    w2 = jnp.transpose(wpw, (1, 0))[:, :, None, None]           # (Cout, Cin, 1, 1)
    y = lax.conv_general_dilated(
        y, w2, (1, 1), ((0, 0), (0, 0)),
        dimension_numbers=("NCHW", "OIHW", "NCHW"))
    y = (y - m2[None, :, None, None]) / jnp.sqrt(v2 + EPS)[None, :, None, None]
    y = y * g2[None, :, None, None] + b2[None, :, None, None]
    return jnp.maximum(y, 0.0)


if __name__ == "__main__":
    N, Cin, H, W = 2, 4, 16, 16
    Cout = 8

    key = jax.random.PRNGKey(0)
    ks = jax.random.split(key, 12)
    x = jax.random.normal(ks[0], (N, Cin, H, W), jnp.float32)

    # Deterministic synthetic parameters (shapes follow the PyTorch module).
    wdw = jax.random.normal(ks[1], (3, 3, Cin), jnp.float32) * 0.2   # depthwise 3x3
    wpw = jax.random.normal(ks[2], (Cin, Cout), jnp.float32) * 0.2   # pointwise 1x1
    g1 = jax.random.uniform(ks[3], (Cin,), jnp.float32, 0.5, 1.5)
    b1 = jax.random.normal(ks[4], (Cin,), jnp.float32) * 0.1
    m1 = jax.random.normal(ks[5], (Cin,), jnp.float32) * 0.1
    v1 = jax.random.uniform(ks[6], (Cin,), jnp.float32, 0.5, 1.5)
    g2 = jax.random.uniform(ks[7], (Cout,), jnp.float32, 0.5, 1.5)
    b2 = jax.random.normal(ks[8], (Cout,), jnp.float32) * 0.1
    m2 = jax.random.normal(ks[9], (Cout,), jnp.float32) * 0.1
    v2 = jax.random.uniform(ks[10], (Cout,), jnp.float32, 0.5, 1.5)
    params = (wdw, wpw, g1, b1, m1, v1, g2, b2, m2, v2)

    # Check both a strided (s=2) and a stride-1 block.
    for stride in (2, 1):
        out = jax.block_until_ready(conv_dw_forward(x, params, stride))
        ref = jax.block_until_ready(conv_dw_reference(x, params, stride))
        assert out.shape == ref.shape == (
            N, Cout, (H + 2 - 3) // stride + 1, (W + 2 - 3) // stride + 1)
        assert jnp.allclose(out, ref, rtol=1e-4, atol=1e-4), (
            f"mismatch vs reference (stride={stride})")

    print("KERNEL_OK")
</pallas_src>

<mosaic_0001>
module attributes {stable_mosaic.version = 11 : i64} {
  func.func @_convdw_kernel(%arg0: i32, %arg1: i32, %arg2: memref<2x4x9x9x4xf32, #tpu.memory_space<vmem>>, %arg3: memref<9x4xf32, #tpu.memory_space<vmem>>, %arg4: memref<4x128xf32, #tpu.memory_space<vmem>>, %arg5: memref<1x4xf32, #tpu.memory_space<vmem>>, %arg6: memref<1x128xf32, #tpu.memory_space<vmem>>, %arg7: memref<2x64x128xf32, #tpu.memory_space<vmem>>) attributes {dimension_semantics = [#tpu.dimension_semantics<parallel>, #tpu.dimension_semantics<parallel>], iteration_bounds = array<i64: 1, 1>, scalar_prefetch = 0 : i64, scratch_operands = 0 : i64, tpu.core_type = #tpu.core_type<tc>, window_params = [{transform_indices = @transform_0, window_bounds = array<i64: 2, 4, 9, 9, 4>}, {pipeline_mode = #tpu.pipeline_mode<synchronous>, transform_indices = @transform_1, window_bounds = array<i64: 9, 4>}, {pipeline_mode = #tpu.pipeline_mode<synchronous>, transform_indices = @transform_2, window_bounds = array<i64: 4, 128>}, {pipeline_mode = #tpu.pipeline_mode<synchronous>, transform_indices = @transform_3, window_bounds = array<i64: 1, 4>}, {pipeline_mode = #tpu.pipeline_mode<synchronous>, transform_indices = @transform_4, window_bounds = array<i64: 1, 128>}, {transform_indices = @transform_5, window_bounds = array<i64: 2, 64, 128>}]} {
    %c8_i32 = arith.constant 8 : i32
    %0 = arith.muli %arg1, %c8_i32 : i32
    %1 = tpu.assume_multiple %0, 8 : i32
    %c0 = arith.constant 0 : index
    %c0_0 = arith.constant 0 : index
    %2 = vector.load %arg3[%c0, %c0_0] : memref<9x4xf32, #tpu.memory_space<vmem>>, vector<9x4xf32>
    %c0_1 = arith.constant 0 : index
    %c0_2 = arith.constant 0 : index
    %3 = vector.load %arg4[%c0_1, %c0_2] : memref<4x128xf32, #tpu.memory_space<vmem>>, vector<4x128xf32>
    %c0_3 = arith.constant 0 : index
    %c0_4 = arith.constant 0 : index
    %4 = vector.load %arg5[%c0_3, %c0_4] : memref<1x4xf32, #tpu.memory_space<vmem>>, vector<1x4xf32>
    %5 = vector.shape_cast %4 : vector<1x4xf32> to vector<4xf32>
    %c0_5 = arith.constant 0 : index
    %c0_6 = arith.constant 0 : index
    %6 = vector.load %arg6[%c0_5, %c0_6] : memref<1x128xf32, #tpu.memory_space<vmem>>, vector<1x128xf32>
    %7 = vector.shape_cast %6 : vector<1x128xf32> to vector<128xf32>
    %c0_i32 = arith.constant 0 : i32
    %8 = arith.addi %1, %c0_i32 : i32
    %c0_i32_7 = arith.constant 0 : i32
    %9 = arith.addi %8, %c0_i32_7 : i32
    %c0_8 = arith.constant 0 : index
    %c0_9 = arith.constant 0 : index
    %10 = arith.index_cast %9 : i32 to index
    %c0_10 = arith.constant 0 : index
    %c0_11 = arith.constant 0 : index
    %11 = vector.load %arg2[%c0_8, %c0_9, %10, %c0_10, %c0_11] : memref<2x4x9x9x4xf32, #tpu.memory_space<vmem>>, vector<1x1x8x8x4xf32>
    %12 = vector.shape_cast %11 : vector<1x1x8x8x4xf32> to vector<8x8x4xf32>
    %13 = vector.extract_strided_slice %2 {offsets = [0, 0], sizes = [1, 4], strides = [1, 1]} : vector<9x4xf32> to vector<1x4xf32>
    %14 = vector.shape_cast %13 : vector<1x4xf32> to vector<4xf32>
    %15 = vector.shape_cast %14 : vector<4xf32> to vector<1x1x4xf32>
    %16 = vector.broadcast %15 : vector<1x1x4xf32> to vector<8x8x4xf32>
    %17 = arith.mulf %12, %16 : vector<8x8x4xf32>
    %c0_i32_12 = arith.constant 0 : i32
    %18 = arith.addi %1, %c0_i32_12 : i32
    %c0_i32_13 = arith.constant 0 : i32
    %19 = arith.addi %18, %c0_i32_13 : i32
    %c0_14 = arith.constant 0 : index
    %c1 = arith.constant 1 : index
    %20 = arith.index_cast %19 : i32 to index
    %c0_15 = arith.constant 0 : index
    %c0_16 = arith.constant 0 : index
    %21 = vector.load %arg2[%c0_14, %c1, %20, %c0_15, %c0_16] : memref<2x4x9x9x4xf32, #tpu.memory_space<vmem>>, vector<1x1x8x8x4xf32>
    %22 = vector.shape_cast %21 : vector<1x1x8x8x4xf32> to vector<8x8x4xf32>
    %23 = vector.extract_strided_slice %2 {offsets = [1, 0], sizes = [1, 4], strides = [1, 1]} : vector<9x4xf32> to vector<1x4xf32>
    %24 = vector.shape_cast %23 : vector<1x4xf32> to vector<4xf32>
    %25 = vector.shape_cast %24 : vector<4xf32> to vector<1x1x4xf32>
    %26 = vector.broadcast %25 : vector<1x1x4xf32> to vector<8x8x4xf32>
    %27 = arith.mulf %22, %26 : vector<8x8x4xf32>
    %28 = arith.addf %17, %27 : vector<8x8x4xf32>
    %c0_i32_17 = arith.constant 0 : i32
    %29 = arith.addi %1, %c0_i32_17 : i32
    %c0_i32_18 = arith.constant 0 : i32
    %30 = arith.addi %29, %c0_i32_18 : i32
    %c0_19 = arith.constant 0 : index
    %c0_20 = arith.constant 0 : index
    %31 = arith.index_cast %30 : i32 to index
    %c1_21 = arith.constant 1 : index
    %c0_22 = arith.constant 0 : index
    %32 = vector.load %arg2[%c0_19, %c0_20, %31, %c1_21, %c0_22] : memref<2x4x9x9x4xf32, #tpu.memory_space<vmem>>, vector<1x1x8x8x4xf32>
    %33 = vector.shape_cast %32 : vector<1x1x8x8x4xf32> to vector<8x8x4xf32>
    %34 = vector.extract_strided_slice %2 {offsets = [2, 0], sizes = [1, 4], strides = [1, 1]} : vector<9x4xf32> to vector<1x4xf32>
    %35 = vector.shape_cast %34 : vector<1x4xf32> to vector<4xf32>
    %36 = vector.shape_cast %35 : vector<4xf32> to vector<1x1x4xf32>
    %37 = vector.broadcast %36 : vector<1x1x4xf32> to vector<8x8x4xf32>
    %38 = arith.mulf %33, %37 : vector<8x8x4xf32>
    %39 = arith.addf %28, %38 : vector<8x8x4xf32>
    %c0_i32_23 = arith.constant 0 : i32
    %40 = arith.addi %1, %c0_i32_23 : i32
    %c0_i32_24 = arith.constant 0 : i32
    %41 = arith.addi %40, %c0_i32_24 : i32
    %c0_25 = arith.constant 0 : index
    %c2 = arith.constant 2 : index
    %42 = arith.index_cast %41 : i32 to index
    %c0_26 = arith.constant 0 : index
    %c0_27 = arith.constant 0 : index
    %43 = vector.load %arg2[%c0_25, %c2, %42, %c0_26, %c0_27] : memref<2x4x9x9x4xf32, #tpu.memory_space<vmem>>, vector<1x1x8x8x4xf32>
    %44 = vector.shape_cast %43 : vector<1x1x8x8x4xf32> to vector<8x8x4xf32>
    %45 = vector.extract_strided_slice %2 {offsets = [3, 0], sizes = [1, 4], strides = [1, 1]} : vector<9x4xf32> to vector<1x4xf32>
    %46 = vector.shape_cast %45 : vector<1x4xf32> to vector<4xf32>
    %47 = vector.shape_cast %46 : vector<4xf32> to vector<1x1x4xf32>
    %48 = vector.broadcast %47 : vector<1x1x4xf32> to vector<8x8x4xf32>
    %49 = arith.mulf %44, %48 : vector<8x8x4xf32>
    %50 = arith.addf %39, %49 : vector<8x8x4xf32>
    %c0_i32_28 = arith.constant 0 : i32
    %51 = arith.addi %1, %c0_i32_28 : i32
    %c0_i32_29 = arith.constant 0 : i32
    %52 = arith.addi %51, %c0_i32_29 : i32
    %c0_30 = arith.constant 0 : index
    %c3 = arith.constant 3 : index
    %53 = arith.index_cast %52 : i32 to index
    %c0_31 = arith.constant 0 : index
    %c0_32 = arith.constant 0 : index
    %54 = vector.load %arg2[%c0_30, %c3, %53, %c0_31, %c0_32] : memref<2x4x9x9x4xf32, #tpu.memory_space<vmem>>, vector<1x1x8x8x4xf32>
    %55 = vector.shape_cast %54 : vector<1x1x8x8x4xf32> to vector<8x8x4xf32>
    %56 = vector.extract_strided_slice %2 {offsets = [4, 0], sizes = [1, 4], strides = [1, 1]} : vector<9x4xf32> to vector<1x4xf32>
    %57 = vector.shape_cast %56 : vector<1x4xf32> to vector<4xf32>
    %58 = vector.shape_cast %57 : vector<4xf32> to vector<1x1x4xf32>
    %59 = vector.broadcast %58 : vector<1x1x4xf32> to vector<8x8x4xf32>
    %60 = arith.mulf %55, %59 : vector<8x8x4xf32>
    %61 = arith.addf %50, %60 : vector<8x8x4xf32>
    %c0_i32_33 = arith.constant 0 : i32
    %62 = arith.addi %1, %c0_i32_33 : i32
    %c0_i32_34 = arith.constant 0 : i32
    %63 = arith.addi %62, %c0_i32_34 : i32
    %c0_35 = arith.constant 0 : index
    %c2_36 = arith.constant 2 : index
    %64 = arith.index_cast %63 : i32 to index
    %c1_37 = arith.constant 1 : index
    %c0_38 = arith.constant 0 : index
    %65 = vector.load %arg2[%c0_35, %c2_36, %64, %c1_37, %c0_38] : memref<2x4x9x9x4xf32, #tpu.memory_space<vmem>>, vector<1x1x8x8x4xf32>
    %66 = vector.shape_cast %65 : vector<1x1x8x8x4xf32> to vector<8x8x4xf32>
    %67 = vector.extract_strided_slice %2 {offsets = [5, 0], sizes = [1, 4], strides = [1, 1]} : vector<9x4xf32> to vector<1x4xf32>
    %68 = vector.shape_cast %67 : vector<1x4xf32> to vector<4xf32>
    %69 = vector.shape_cast %68 : vector<4xf32> to vector<1x1x4xf32>
    %70 = vector.broadcast %69 : vector<1x1x4xf32> to vector<8x8x4xf32>
    %71 = arith.mulf %66, %70 : vector<8x8x4xf32>
    %72 = arith.addf %61, %71 : vector<8x8x4xf32>
    %c0_i32_39 = arith.constant 0 : i32
    %73 = arith.addi %1, %c0_i32_39 : i32
    %c1_i32 = arith.constant 1 : i32
    %74 = arith.addi %73, %c1_i32 : i32
    %c0_40 = arith.constant 0 : index
    %c0_41 = arith.constant 0 : index
    %75 = arith.index_cast %74 : i32 to index
    %c0_42 = arith.constant 0 : index
    %c0_43 = arith.constant 0 : index
    %76 = vector.load %arg2[%c0_40, %c0_41, %75, %c0_42, %c0_43] : memref<2x4x9x9x4xf32, #tpu.memory_space<vmem>>, vector<1x1x8x8x4xf32>
    %77 = vector.shape_cast %76 : vector<1x1x8x8x4xf32> to vector<8x8x4xf32>
    %78 = vector.extract_strided_slice %2 {offsets = [6, 0], sizes = [1, 4], strides = [1, 1]} : vector<9x4xf32> to vector<1x4xf32>
    %79 = vector.shape_cast %78 : vector<1x4xf32> to vector<4xf32>
    %80 = vector.shape_cast %79 : vector<4xf32> to vector<1x1x4xf32>
    %81 = vector.broadcast %80 : vector<1x1x4xf32> to vector<8x8x4xf32>
    %82 = arith.mulf %77, %81 : vector<8x8x4xf32>
    %83 = arith.addf %72, %82 : vector<8x8x4xf32>
    %c0_i32_44 = arith.constant 0 : i32
    %84 = arith.addi %1, %c0_i32_44 : i32
    %c1_i32_45 = arith.constant 1 : i32
    %85 = arith.addi %84, %c1_i32_45 : i32
    %c0_46 = arith.constant 0 : index
    %c1_47 = arith.constant 1 : index
    %86 = arith.index_cast %85 : i32 to index
    %c0_48 = arith.constant 0 : index
    %c0_49 = arith.constant 0 : index
    %87 = vector.load %arg2[%c0_46, %c1_47, %86, %c0_48, %c0_49] : memref<2x4x9x9x4xf32, #tpu.memory_space<vmem>>, vector<1x1x8x8x4xf32>
    %88 = vector.shape_cast %87 : vector<1x1x8x8x4xf32> to vector<8x8x4xf32>
    %89 = vector.extract_strided_slice %2 {offsets = [7, 0], sizes = [1, 4], strides = [1, 1]} : vector<9x4xf32> to vector<1x4xf32>
    %90 = vector.shape_cast %89 : vector<1x4xf32> to vector<4xf32>
    %91 = vector.shape_cast %90 : vector<4xf32> to vector<1x1x4xf32>
    %92 = vector.broadcast %91 : vector<1x1x4xf32> to vector<8x8x4xf32>
    %93 = arith.mulf %88, %92 : vector<8x8x4xf32>
    %94 = arith.addf %83, %93 : vector<8x8x4xf32>
    %c0_i32_50 = arith.constant 0 : i32
    %95 = arith.addi %1, %c0_i32_50 : i32
    %c1_i32_51 = arith.constant 1 : i32
    %96 = arith.addi %95, %c1_i32_51 : i32
    %c0_52 = arith.constant 0 : index
    %c0_53 = arith.constant 0 : index
    %97 = arith.index_cast %96 : i32 to index
    %c1_54 = arith.constant 1 : index
    %c0_55 = arith.constant 0 : index
    %98 = vector.load %arg2[%c0_52, %c0_53, %97, %c1_54, %c0_55] : memref<2x4x9x9x4xf32, #tpu.memory_space<vmem>>, vector<1x1x8x8x4xf32>
    %99 = vector.shape_cast %98 : vector<1x1x8x8x4xf32> to vector<8x8x4xf32>
    %100 = vector.extract_strided_slice %2 {offsets = [8, 0], sizes = [1, 4], strides = [1, 1]} : vector<9x4xf32> to vector<1x4xf32>
    %101 = vector.shape_cast %100 : vector<1x4xf32> to vector<4xf32>
    %102 = vector.shape_cast %101 : vector<4xf32> to vector<1x1x4xf32>
    %103 = vector.broadcast %102 : vector<1x1x4xf32> to vector<8x8x4xf32>
    %104 = arith.mulf %99, %103 : vector<8x8x4xf32>
    %105 = arith.addf %94, %104 : vector<8x8x4xf32>
    %106 = vector.shape_cast %5 : vector<4xf32> to vector<1x1x4xf32>
    %107 = vector.broadcast %106 : vector<1x1x4xf32> to vector<8x8x4xf32>
    %108 = arith.addf %105, %107 : vector<8x8x4xf32>
    %cst = arith.constant 0.000000e+00 : f32
    %109 = vector.broadcast %cst : f32 to vector<8x8x4xf32>
    %110 = arith.maximumf %108, %109 : vector<8x8x4xf32>
    %111 = vector.shape_cast %110 : vector<8x8x4xf32> to vector<64x4xf32>
    %cst_56 = arith.constant dense<0.000000e+00> : vector<64x128xf32>
    %112 = tpu.matmul %111, %3, %cst_56 {dimension_numbers = #tpu.dot_dimension_numbers<[1], [0], [0], [1], [0, 0, 1, 1], [], []>} : vector<64x4xf32>, vector<4x128xf32>, vector<64x128xf32> -> vector<64x128xf32>
    %113 = vector.shape_cast %7 : vector<128xf32> to vector<1x128xf32>
    %114 = vector.broadcast %113 : vector<1x128xf32> to vector<64x128xf32>
    %115 = arith.addf %112, %114 : vector<64x128xf32>
    %cst_57 = arith.constant 0.000000e+00 : f32
    %116 = vector.broadcast %cst_57 : f32 to vector<64x128xf32>
    %117 = arith.maximumf %115, %116 : vector<64x128xf32>
    %c0_58 = arith.constant 0 : index
    %c0_59 = arith.constant 0 : index
    %c0_60 = arith.constant 0 : index
    %118 = vector.load %arg7[%c0_58, %c0_59, %c0_60] : memref<2x64x128xf32, #tpu.memory_space<vmem>>, vector<1x64x128xf32>
    %119 = vector.shape_cast %118 : vector<1x64x128xf32> to vector<64x128xf32>
    %120 = vector.shape_cast %117 : vector<64x128xf32> to vector<1x64x128xf32>
    tpu.vector_store %arg7[%c0_58, %c0_59, %c0_60], %120 {strides = array<i32>} : memref<2x64x128xf32, #tpu.memory_space<vmem>>, vector<1x64x128xf32>,
    %c0_i32_61 = arith.constant 0 : i32
    %121 = arith.addi %1, %c0_i32_61 : i32
    %c0_i32_62 = arith.constant 0 : i32
    %122 = arith.addi %121, %c0_i32_62 : i32
    %c1_63 = arith.constant 1 : index
    %c0_64 = arith.constant 0 : index
    %123 = arith.index_cast %122 : i32 to index
    %c0_65 = arith.constant 0 : index
    %c0_66 = arith.constant 0 : index
    %124 = vector.load %arg2[%c1_63, %c0_64, %123, %c0_65, %c0_66] : memref<2x4x9x9x4xf32, #tpu.memory_space<vmem>>, vector<1x1x8x8x4xf32>
    %125 = vector.shape_cast %124 : vector<1x1x8x8x4xf32> to vector<8x8x4xf32>
    %126 = vector.extract_strided_slice %2 {offsets = [0, 0], sizes = [1, 4], strides = [1, 1]} : vector<9x4xf32> to vector<1x4xf32>
    %127 = vector.shape_cast %126 : vector<1x4xf32> to vector<4xf32>
    %128 = vector.shape_cast %127 : vector<4xf32> to vector<1x1x4xf32>
    %129 = vector.broadcast %128 : vector<1x1x4xf32> to vector<8x8x4xf32>
    %130 = arith.mulf %125, %129 : vector<8x8x4xf32>
    %c0_i32_67 = arith.constant 0 : i32
    %131 = arith.addi %1, %c0_i32_67 : i32
    %c0_i32_68 = arith.constant 0 : i32
    %132 = arith.addi %131, %c0_i32_68 : i32
    %c1_69 = arith.constant 1 : index
    %c1_70 = arith.constant 1 : index
    %133 = arith.index_cast %132 : i32 to index
    %c0_71 = arith.constant 0 : index
    %c0_72 = arith.constant 0 : index
    %134 = vector.load %arg2[%c1_69, %c1_70, %133, %c0_71, %c0_72] : memref<2x4x9x9x4xf32, #tpu.memory_space<vmem>>, vector<1x1x8x8x4xf32>
    %135 = vector.shape_cast %134 : vector<1x1x8x8x4xf32> to vector<8x8x4xf32>
    %136 = vector.extract_strided_slice %2 {offsets = [1, 0], sizes = [1, 4], strides = [1, 1]} : vector<9x4xf32> to vector<1x4xf32>
    %137 = vector.shape_cast %136 : vector<1x4xf32> to vector<4xf32>
    %138 = vector.shape_cast %137 : vector<4xf32> to vector<1x1x4xf32>
    %139 = vector.broadcast %138 : vector<1x1x4xf32> to vector<8x8x4xf32>
    %140 = arith.mulf %135, %139 : vector<8x8x4xf32>
    %141 = arith.addf %130, %140 : vector<8x8x4xf32>
    %c0_i32_73 = arith.constant 0 : i32
    %142 = arith.addi %1, %c0_i32_73 : i32
    %c0_i32_74 = arith.constant 0 : i32
    %143 = arith.addi %142, %c0_i32_74 : i32
    %c1_75 = arith.constant 1 : index
    %c0_76 = arith.constant 0 : index
    %144 = arith.index_cast %143 : i32 to index
    %c1_77 = arith.constant 1 : index
    %c0_78 = arith.constant 0 : index
    %145 = vector.load %arg2[%c1_75, %c0_76, %144, %c1_77, %c0_78] : memref<2x4x9x9x4xf32, #tpu.memory_space<vmem>>, vector<1x1x8x8x4xf32>
    %146 = vector.shape_cast %145 : vector<1x1x8x8x4xf32> to vector<8x8x4xf32>
    %147 = vector.extract_strided_slice %2 {offsets = [2, 0], sizes = [1, 4], strides = [1, 1]} : vector<9x4xf32> to vector<1x4xf32>
    %148 = vector.shape_cast %147 : vector<1x4xf32> to vector<4xf32>
    %149 = vector.shape_cast %148 : vector<4xf32> to vector<1x1x4xf32>
    %150 = vector.broadcast %149 : vector<1x1x4xf32> to vector<8x8x4xf32>
    %151 = arith.mulf %146, %150 : vector<8x8x4xf32>
    %152 = arith.addf %141, %151 : vector<8x8x4xf32>
    %c0_i32_79 = arith.constant 0 : i32
    %153 = arith.addi %1, %c0_i32_79 : i32
    %c0_i32_80 = arith.constant 0 : i32
    %154 = arith.addi %153, %c0_i32_80 : i32
    %c1_81 = arith.constant 1 : index
    %c2_82 = arith.constant 2 : index
    %155 = arith.index_cast %154 : i32 to index
    %c0_83 = arith.constant 0 : index
    %c0_84 = arith.constant 0 : index
    %156 = vector.load %arg2[%c1_81, %c2_82, %155, %c0_83, %c0_84] : memref<2x4x9x9x4xf32, #tpu.memory_space<vmem>>, vector<1x1x8x8x4xf32>
    %157 = vector.shape_cast %156 : vector<1x1x8x8x4xf32> to vector<8x8x4xf32>
    %158 = vector.extract_strided_slice %2 {offsets = [3, 0], sizes = [1, 4], strides = [1, 1]} : vector<9x4xf32> to vector<1x4xf32>
    %159 = vector.shape_cast %158 : vector<1x4xf32> to vector<4xf32>
    %160 = vector.shape_cast %159 : vector<4xf32> to vector<1x1x4xf32>
    %161 = vector.broadcast %160 : vector<1x1x4xf32> to vector<8x8x4xf32>
    %162 = arith.mulf %157, %161 : vector<8x8x4xf32>
    %163 = arith.addf %152, %162 : vector<8x8x4xf32>
    %c0_i32_85 = arith.constant 0 : i32
    %164 = arith.addi %1, %c0_i32_85 : i32
    %c0_i32_86 = arith.constant 0 : i32
    %165 = arith.addi %164, %c0_i32_86 : i32
    %c1_87 = arith.constant 1 : index
    %c3_88 = arith.constant 3 : index
    %166 = arith.index_cast %165 : i32 to index
    %c0_89 = arith.constant 0 : index
    %c0_90 = arith.constant 0 : index
    %167 = vector.load %arg2[%c1_87, %c3_88, %166, %c0_89, %c0_90] : memref<2x4x9x9x4xf32, #tpu.memory_space<vmem>>, vector<1x1x8x8x4xf32>
    %168 = vector.shape_cast %167 : vector<1x1x8x8x4xf32> to vector<8x8x4xf32>
    %169 = vector.extract_strided_slice %2 {offsets = [4, 0], sizes = [1, 4], strides = [1, 1]} : vector<9x4xf32> to vector<1x4xf32>
    %170 = vector.shape_cast %169 : vector<1x4xf32> to vector<4xf32>
    %171 = vector.shape_cast %170 : vector<4xf32> to vector<1x1x4xf32>
    %172 = vector.broadcast %171 : vector<1x1x4xf32> to vector<8x8x4xf32>
    %173 = arith.mulf %168, %172 : vector<8x8x4xf32>
    %174 = arith.addf %163, %173 : vector<8x8x4xf32>
    %c0_i32_91 = arith.constant 0 : i32
    %175 = arith.addi %1, %c0_i32_91 : i32
    %c0_i32_92 = arith.constant 0 : i32
    %176 = arith.addi %175, %c0_i32_92 : i32
    %c1_93 = arith.constant 1 : index
    %c2_94 = arith.constant 2 : index
    %177 = arith.index_cast %176 : i32 to index
    %c1_95 = arith.constant 1 : index
    %c0_96 = arith.constant 0 : index
    %178 = vector.load %arg2[%c1_93, %c2_94, %177, %c1_95, %c0_96] : memref<2x4x9x9x4xf32, #tpu.memory_space<vmem>>, vector<1x1x8x8x4xf32>
    %179 = vector.shape_cast %178 : vector<1x1x8x8x4xf32> to vector<8x8x4xf32>
    %180 = vector.extract_strided_slice %2 {offsets = [5, 0], sizes = [1, 4], strides = [1, 1]} : vector<9x4xf32> to vector<1x4xf32>
    %181 = vector.shape_cast %180 : vector<1x4xf32> to vector<4xf32>
    %182 = vector.shape_cast %181 : vector<4xf32> to vector<1x1x4xf32>
    %183 = vector.broadcast %182 : vector<1x1x4xf32> to vector<8x8x4xf32>
    %184 = arith.mulf %179, %183 : vector<8x8x4xf32>
    %185 = arith.addf %174, %184 : vector<8x8x4xf32>
    %c0_i32_97 = arith.constant 0 : i32
    %186 = arith.addi %1, %c0_i32_97 : i32
    %c1_i32_98 = arith.constant 1 : i32
    %187 = arith.addi %186, %c1_i32_98 : i32
    %c1_99 = arith.constant 1 : index
    %c0_100 = arith.constant 0 : index
    %188 = arith.index_cast %187 : i32 to index
    %c0_101 = arith.constant 0 : index
    %c0_102 = arith.constant 0 : index
    %189 = vector.load %arg2[%c1_99, %c0_100, %188, %c0_101, %c0_102] : memref<2x4x9x9x4xf32, #tpu.memory_space<vmem>>, vector<1x1x8x8x4xf32>
    %190 = vector.shape_cast %189 : vector<1x1x8x8x4xf32> to vector<8x8x4xf32>
    %191 = vector.extract_strided_slice %2 {offsets = [6, 0], sizes = [1, 4], strides = [1, 1]} : vector<9x4xf32> to vector<1x4xf32>
    %192 = vector.shape_cast %191 : vector<1x4xf32> to vector<4xf32>
    %193 = vector.shape_cast %192 : vector<4xf32> to vector<1x1x4xf32>
    %194 = vector.broadcast %193 : vector<1x1x4xf32> to vector<8x8x4xf32>
    %195 = arith.mulf %190, %194 : vector<8x8x4xf32>
    %196 = arith.addf %185, %195 : vector<8x8x4xf32>
    %c0_i32_103 = arith.constant 0 : i32
    %197 = arith.addi %1, %c0_i32_103 : i32
    %c1_i32_104 = arith.constant 1 : i32
    %198 = arith.addi %197, %c1_i32_104 : i32
    %c1_105 = arith.constant 1 : index
    %c1_106 = arith.constant 1 : index
    %199 = arith.index_cast %198 : i32 to index
    %c0_107 = arith.constant 0 : index
    %c0_108 = arith.constant 0 : index
    %200 = vector.load %arg2[%c1_105, %c1_106, %199, %c0_107, %c0_108] : memref<2x4x9x9x4xf32, #tpu.memory_space<vmem>>, vector<1x1x8x8x4xf32>
    %201 = vector.shape_cast %200 : vector<1x1x8x8x4xf32> to vector<8x8x4xf32>
    %202 = vector.extract_strided_slice %2 {offsets = [7, 0], sizes = [1, 4], strides = [1, 1]} : vector<9x4xf32> to vector<1x4xf32>
    %203 = vector.shape_cast %202 : vector<1x4xf32> to vector<4xf32>
    %204 = vector.shape_cast %203 : vector<4xf32> to vector<1x1x4xf32>
    %205 = vector.broadcast %204 : vector<1x1x4xf32> to vector<8x8x4xf32>
    %206 = arith.mulf %201, %205 : vector<8x8x4xf32>
    %207 = arith.addf %196, %206 : vector<8x8x4xf32>
    %c0_i32_109 = arith.constant 0 : i32
    %208 = arith.addi %1, %c0_i32_109 : i32
    %c1_i32_110 = arith.constant 1 : i32
    %209 = arith.addi %208, %c1_i32_110 : i32
    %c1_111 = arith.constant 1 : index
    %c0_112 = arith.constant 0 : index
    %210 = arith.index_cast %209 : i32 to index
    %c1_113 = arith.constant 1 : index
    %c0_114 = arith.constant 0 : index
    %211 = vector.load %arg2[%c1_111, %c0_112, %210, %c1_113, %c0_114] : memref<2x4x9x9x4xf32, #tpu.memory_space<vmem>>, vector<1x1x8x8x4xf32>
    %212 = vector.shape_cast %211 : vector<1x1x8x8x4xf32> to vector<8x8x4xf32>
    %213 = vector.extract_strided_slice %2 {offsets = [8, 0], sizes = [1, 4], strides = [1, 1]} : vector<9x4xf32> to vector<1x4xf32>
    %214 = vector.shape_cast %213 : vector<1x4xf32> to vector<4xf32>
    %215 = vector.shape_cast %214 : vector<4xf32> to vector<1x1x4xf32>
    %216 = vector.broadcast %215 : vector<1x1x4xf32> to vector<8x8x4xf32>
    %217 = arith.mulf %212, %216 : vector<8x8x4xf32>
    %218 = arith.addf %207, %217 : vector<8x8x4xf32>
    %219 = vector.shape_cast %5 : vector<4xf32> to vector<1x1x4xf32>
    %220 = vector.broadcast %219 : vector<1x1x4xf32> to vector<8x8x4xf32>
    %221 = arith.addf %218, %220 : vector<8x8x4xf32>
    %cst_115 = arith.constant 0.000000e+00 : f32
    %222 = vector.broadcast %cst_115 : f32 to vector<8x8x4xf32>
    %223 = arith.maximumf %221, %222 : vector<8x8x4xf32>
    %224 = vector.shape_cast %223 : vector<8x8x4xf32> to vector<64x4xf32>
    %cst_116 = arith.constant dense<0.000000e+00> : vector<64x128xf32>
    %225 = tpu.matmul %224, %3, %cst_116 {dimension_numbers = #tpu.dot_dimension_numbers<[1], [0], [0], [1], [0, 0, 1, 1], [], []>} : vector<64x4xf32>, vector<4x128xf32>, vector<64x128xf32> -> vector<64x128xf32>
    %226 = vector.shape_cast %7 : vector<128xf32> to vector<1x128xf32>
    %227 = vector.broadcast %226 : vector<1x128xf32> to vector<64x128xf32>
    %228 = arith.addf %225, %227 : vector<64x128xf32>
    %cst_117 = arith.constant 0.000000e+00 : f32
    %229 = vector.broadcast %cst_117 : f32 to vector<64x128xf32>
    %230 = arith.maximumf %228, %229 : vector<64x128xf32>
    %c1_118 = arith.constant 1 : index
    %c0_119 = arith.constant 0 : index
    %c0_120 = arith.constant 0 : index
    %231 = vector.load %arg7[%c1_118, %c0_119, %c0_120] : memref<2x64x128xf32, #tpu.memory_space<vmem>>, vector<1x64x128xf32>
    %232 = vector.shape_cast %231 : vector<1x64x128xf32> to vector<64x128xf32>
    %233 = vector.shape_cast %230 : vector<64x128xf32> to vector<1x64x128xf32>
    tpu.vector_store %arg7[%c1_118, %c0_119, %c0_120], %233 {strides = array<i32>} : memref<2x64x128xf32, #tpu.memory_space<vmem>>, vector<1x64x128xf32>,
    return
  }
  func.func @transform_0(%arg0: i32, %arg1: i32) -> (i32, i32, i32, i32, i32) {
    %c0_i32 = arith.constant 0 : i32
    %c0_i32_0 = arith.constant 0 : i32
    %c0_i32_1 = arith.constant 0 : i32
    %c0_i32_2 = arith.constant 0 : i32
    %c0_i32_3 = arith.constant 0 : i32
    return %arg0, %c0_i32, %c0_i32_0, %c0_i32_1, %c0_i32_2 : i32, i32, i32, i32, i32
  }
  func.func @transform_1(%arg0: i32, %arg1: i32) -> (i32, i32) {
    %c0_i32 = arith.constant 0 : i32
    %c0_i32_0 = arith.constant 0 : i32
    %c0_i32_1 = arith.constant 0 : i32
    return %c0_i32, %c0_i32_0 : i32, i32
  }
  func.func @transform_2(%arg0: i32, %arg1: i32) -> (i32, i32) {
    %c0_i32 = arith.constant 0 : i32
    %c0_i32_0 = arith.constant 0 : i32
    %c0_i32_1 = arith.constant 0 : i32
    return %c0_i32, %c0_i32_0 : i32, i32
  }
  func.func @transform_3(%arg0: i32, %arg1: i32) -> (i32, i32) {
    %c0_i32 = arith.constant 0 : i32
    %c0_i32_0 = arith.constant 0 : i32
    %c0_i32_1 = arith.constant 0 : i32
    return %c0_i32, %c0_i32_0 : i32, i32
  }
  func.func @transform_4(%arg0: i32, %arg1: i32) -> (i32, i32) {
    %c0_i32 = arith.constant 0 : i32
    %c0_i32_0 = arith.constant 0 : i32
    %c0_i32_1 = arith.constant 0 : i32
    return %c0_i32, %c0_i32_0 : i32, i32
  }
  func.func @transform_5(%arg0: i32, %arg1: i32) -> (i32, i32, i32) {
    %c0_i32 = arith.constant 0 : i32
    %c0_i32_0 = arith.constant 0 : i32
    return %arg0, %arg1, %c0_i32 : i32, i32, i32
  }
}

</mosaic_0001>

<llo_original>
// kernel: tpu_custom_call.1
$region0: #{tpu_custom_call.1}
  #allocation0 [shape = 'u32[]', space=smem, size = 0x4, offset = 0x4, fixed_abs, tag = 'smem constant byte address 0x4 - core index']
  #allocation1 [shape = 'u32[72,128]{1,0:T(1,128)}', space=vmem, size = 0x9000, scoped, tag = 'internal scratch']
  %s0 = inlined_call_operand.vmem [shape: f32[2,4,9,9,4], index: 0, kind: input, shape index: {}]
  %s1 = inlined_call_operand.vmem [shape: f32[9,4], index: 1, kind: input, shape index: {}]
  %s2 = inlined_call_operand.vmem [shape: f32[4,128], index: 2, kind: input, shape index: {}]
  %s3 = inlined_call_operand.vmem [shape: f32[1,4], index: 3, kind: input, shape index: {}]
  %s4 = inlined_call_operand.vmem [shape: f32[1,128], index: 4, kind: input, shape index: {}]
  %s5 = inlined_call_operand.hbm [shape: f32[2,64,128], index: 5, kind: output, shape index: {}]
  %s6 = sld [smem:[#allocation0]]
  $region30: #{tpu_custom_call.1} parent=0
    _
  %s8 = ssub.s32 1, %s6
  %s9 = scalar_select 0, %s8, %s6
  $region1: #{tpu_custom_call.1} parent=0
    #allocation2 [shape = 'u8[65536]{0}', space=vmem, size = 0x10000, scoped, tag = 'output window, operand 0, single buffered']
    #allocation3 [shape = 's32[1]{0}', space=sflag, size = 0x4, scoped, tag = 'scoped memory for tpu_custom_call.1']
    %10 = vsyncpa [#allocation3], 0
    // Predicated region
    $region2: #{tpu_custom_call.1} parent=1 // pred_check
      _
    $region3: #{tpu_custom_call.1} parent=1 // pred_check_branch
      %12 = sbr.rel (0) target = $region5
    $region4: #{tpu_custom_call.1} parent=1 // pred_region
      _
    $region5: #{tpu_custom_call.1} parent=1 // pred_fallthru
      _
    // Predicated region
    $region6: #{tpu_custom_call.1} parent=1 // pred_check
      _
    $region7: #{tpu_custom_call.1} parent=1 // pred_check_branch
      %14 = sbr.rel (0) target = $region9
    $region8: #{tpu_custom_call.1} parent=1 // pred_region
      _
    $region9: #{tpu_custom_call.1} parent=1 // pred_fallthru
      _
    // Predicated region
    $region10: #{tpu_custom_call.1} parent=1 // pred_check
      _
    $region11: #{tpu_custom_call.1} parent=1 // pred_check_branch
      %16 = sbr.rel (0) target = $region13
    $region12: #{tpu_custom_call.1} parent=1 // pred_region
      _
    $region13: #{tpu_custom_call.1} parent=1 // pred_fallthru
      _
    // Predicated region
    $region14: #{tpu_custom_call.1} parent=1 // pred_check
      _
    $region15: #{tpu_custom_call.1} parent=1 // pred_check_branch
      %18 = sbr.rel (0) target = $region17
    $region16: #{tpu_custom_call.1} parent=1 // pred_region
      _
    $region17: #{tpu_custom_call.1} parent=1 // pred_fallthru
      _
    // Predicated region
    $region18: #{tpu_custom_call.1} parent=1 // pred_check
      _
    $region19: #{tpu_custom_call.1} parent=1 // pred_check_branch
      %20 = sbr.rel (0) target = $region21
    $region20: #{tpu_custom_call.1} parent=1 // pred_region
      _
    $region21: #{tpu_custom_call.1} parent=1 // pred_fallthru
      _
    %s21 = smul.u32 0, 8
    %v22 = vld [vmem:[%s1] sm:$0xff]
    %v23 = vld [vmem:[%s1 + $0x8] sm:$0x1]
    %v24 = vld [vmem:[%s2] sm:$0xf]
    %v25 = vld [vmem:[%s3] sm:$0x1]
    %v26 = vld [vmem:[%s4] sm:$0x1]
    %s27 = smul.u32 %s21, 16
    %s28 = scalar_lea.vmem %s0, %s27
    %v29 = vld [vmem:[%s28] sm:$0xff]
    %v30 = vld [vmem:[%s28 + $0x10] sm:$0xff]
    %v31 = vld [vmem:[%s28 + $0x20] sm:$0xff]
    %v32 = vld [vmem:[%s28 + $0x30] sm:$0xff]
    %v33 = vld [vmem:[%s28 + $0x40] sm:$0xff]
    %v34 = vld [vmem:[%s28 + $0x50] sm:$0xff]
    %v35 = vld [vmem:[%s28 + $0x60] sm:$0xff]
    %v36 = vld [vmem:[%s28 + $0x70] sm:$0xff]
    %v37 = vperm.slane %v22, 0
    %v38 = vmul.f32 %v29, %v37
    %v39 = vmul.f32 %v30, %v37
    %v40 = vmul.f32 %v31, %v37
    %v41 = vmul.f32 %v32, %v37
    %v42 = vmul.f32 %v33, %v37
    %v43 = vmul.f32 %v34, %v37
    %v44 = vmul.f32 %v35, %v37
    %v45 = vmul.f32 %v36, %v37
    %s46 = sadd.s32 %s27, 144
    %s47 = scalar_lea.vmem %s0, %s46
    %v48 = vld [vmem:[%s47] sm:$0xff]
    %v49 = vld [vmem:[%s47 + $0x10] sm:$0xff]
    %v50 = vld [vmem:[%s47 + $0x20] sm:$0xff]
    %v51 = vld [vmem:[%s47 + $0x30] sm:$0xff]
    %v52 = vld [vmem:[%s47 + $0x40] sm:$0xff]
    %v53 = vld [vmem:[%s47 + $0x50] sm:$0xff]
    %v54 = vld [vmem:[%s47 + $0x60] sm:$0xff]
    %v55 = vld [vmem:[%s47 + $0x70] sm:$0xff]
    %v56 = vperm.slane %v22, 1
    %v57 = vmul.f32 %v48, %v56
    %v58 = vmul.f32 %v49, %v56
    %v59 = vmul.f32 %v50, %v56
    %v60 = vmul.f32 %v51, %v56
    %v61 = vmul.f32 %v52, %v56
    %v62 = vmul.f32 %v53, %v56
    %v63 = vmul.f32 %v54, %v56
    %v64 = vmul.f32 %v55, %v56
    %v65 = vadd.f32 %v38, %v57
    %v66 = vadd.f32 %v39, %v58
    %v67 = vadd.f32 %v40, %v59
    %v68 = vadd.f32 %v41, %v60
    %v69 = vadd.f32 %v42, %v61
    %v70 = vadd.f32 %v43, %v62
    %v71 = vadd.f32 %v44, %v63
    %v72 = vadd.f32 %v45, %v64
    %v73 = vld [vmem:[%s28 + $0x1] sm:$0xff]
    %v74 = vld [vmem:[%s28 + $0x11] sm:$0xff]
    %v75 = vld [vmem:[%s28 + $0x21] sm:$0xff]
    %v76 = vld [vmem:[%s28 + $0x31] sm:$0xff]
    %v77 = vld [vmem:[%s28 + $0x41] sm:$0xff]
    %v78 = vld [vmem:[%s28 + $0x51] sm:$0xff]
    %v79 = vld [vmem:[%s28 + $0x61] sm:$0xff]
    %v80 = vld [vmem:[%s28 + $0x71] sm:$0xff]
    %v81 = vperm.slane %v22, 2
    %v82 = vmul.f32 %v73, %v81
    %v83 = vmul.f32 %v74, %v81
    %v84 = vmul.f32 %v75, %v81
    %v85 = vmul.f32 %v76, %v81
    %v86 = vmul.f32 %v77, %v81
    %v87 = vmul.f32 %v78, %v81
    %v88 = vmul.f32 %v79, %v81
    %v89 = vmul.f32 %v80, %v81
    %v90 = vadd.f32 %v65, %v82
    %v91 = vadd.f32 %v66, %v83
    %v92 = vadd.f32 %v67, %v84
    %v93 = vadd.f32 %v68, %v85
    %v94 = vadd.f32 %v69, %v86
    %v95 = vadd.f32 %v70, %v87
    %v96 = vadd.f32 %v71, %v88
    %v97 = vadd.f32 %v72, %v89
    %s98 = sadd.s32 %s27, 288
    %s99 = scalar_lea.vmem %s0, %s98
    %v100 = vld [vmem:[%s99] sm:$0xff]
    %v101 = vld [vmem:[%s99 + $0x10] sm:$0xff]
    %v102 = vld [vmem:[%s99 + $0x20] sm:$0xff]
    %v103 = vld [vmem:[%s99 + $0x30] sm:$0xff]
    %v104 = vld [vmem:[%s99 + $0x40] sm:$0xff]
    %v105 = vld [vmem:[%s99 + $0x50] sm:$0xff]
    %v106 = vld [vmem:[%s99 + $0x60] sm:$0xff]
    %v107 = vld [vmem:[%s99 + $0x70] sm:$0xff]
    %v108 = vperm.slane %v22, 3
    %v109 = vmul.f32 %v100, %v108
    %v110 = vmul.f32 %v101, %v108
    %v111 = vmul.f32 %v102, %v108
    %v112 = vmul.f32 %v103, %v108
    %v113 = vmul.f32 %v104, %v108
    %v114 = vmul.f32 %v105, %v108
    %v115 = vmul.f32 %v106, %v108
    %v116 = vmul.f32 %v107, %v108
    %v117 = vadd.f32 %v90, %v109
    %v118 = vadd.f32 %v91, %v110
    %v119 = vadd.f32 %v92, %v111
    %v120 = vadd.f32 %v93, %v112
    %v121 = vadd.f32 %v94, %v113
    %v122 = vadd.f32 %v95, %v114
    %v123 = vadd.f32 %v96, %v115
    %v124 = vadd.f32 %v97, %v116
    %s125 = sadd.s32 %s27, 432
    %s126 = scalar_lea.vmem %s0, %s125
    %v127 = vld [vmem:[%s126] sm:$0xff]
    %v128 = vld [vmem:[%s126 + $0x10] sm:$0xff]
    %v129 = vld [vmem:[%s126 + $0x20] sm:$0xff]
    %v130 = vld [vmem:[%s126 + $0x30] sm:$0xff]
    %v131 = vld [vmem:[%s126 + $0x40] sm:$0xff]
    %v132 = vld [vmem:[%s126 + $0x50] sm:$0xff]
    %v133 = vld [vmem:[%s126 + $0x60] sm:$0xff]
    %v134 = vld [vmem:[%s126 + $0x70] sm:$0xff]
    %v135 = vperm.slane %v22, 4
    %v136 = vmul.f32 %v127, %v135
    %v137 = vmul.f32 %v128, %v135
    %v138 = vmul.f32 %v129, %v135
    %v139 = vmul.f32 %v130, %v135
    %v140 = vmul.f32 %v131, %v135
    %v141 = vmul.f32 %v132, %v135
    %v142 = vmul.f32 %v133, %v135
    %v143 = vmul.f32 %v134, %v135
    %v144 = vadd.f32 %v117, %v136
    %v145 = vadd.f32 %v118, %v137
    %v146 = vadd.f32 %v119, %v138
    %v147 = vadd.f32 %v120, %v139
    %v148 = vadd.f32 %v121, %v140
    %v149 = vadd.f32 %v122, %v141
    %v150 = vadd.f32 %v123, %v142
    %v151 = vadd.f32 %v124, %v143
    %v152 = vld [vmem:[%s99 + $0x1] sm:$0xff]
    %v153 = vld [vmem:[%s99 + $0x11] sm:$0xff]
    %v154 = vld [vmem:[%s99 + $0x21] sm:$0xff]
    %v155 = vld [vmem:[%s99 + $0x31] sm:$0xff]
    %v156 = vld [vmem:[%s99 + $0x41] sm:$0xff]
    %v157 = vld [vmem:[%s99 + $0x51] sm:$0xff]
    %v158 = vld [vmem:[%s99 + $0x61] sm:$0xff]
    %v159 = vld [vmem:[%s99 + $0x71] sm:$0xff]
    %v160 = vperm.slane %v22, 5
    %v161 = vmul.f32 %v152, %v160
    %v162 = vmul.f32 %v153, %v160
    %v163 = vmul.f32 %v154, %v160
    %v164 = vmul.f32 %v155, %v160
    %v165 = vmul.f32 %v156, %v160
    %v166 = vmul.f32 %v157, %v160
    %v167 = vmul.f32 %v158, %v160
    %v168 = vmul.f32 %v159, %v160
    %v169 = vadd.f32 %v144, %v161
    %v170 = vadd.f32 %v145, %v162
    %v171 = vadd.f32 %v146, %v163
    %v172 = vadd.f32 %v147, %v164
    %v173 = vadd.f32 %v148, %v165
    %v174 = vadd.f32 %v149, %v166
    %v175 = vadd.f32 %v150, %v167
    %v176 = vadd.f32 %v151, %v168
    %s177 = sadd.s32 %s21, 1
    %s178 = smul.u32 %s177, 16
    %s179 = scalar_lea.vmem %s0, %s178
    %v180 = vld [vmem:[%s179] sm:$0xff]
    %v181 = vld [vmem:[%s179 + $0x10] sm:$0xff]
    %v182 = vld [vmem:[%s179 + $0x20] sm:$0xff]
    %v183 = vld [vmem:[%s179 + $0x30] sm:$0xff]
    %v184 = vld [vmem:[%s179 + $0x40] sm:$0xff]
    %v185 = vld [vmem:[%s179 + $0x50] sm:$0xff]
    %v186 = vld [vmem:[%s179 + $0x60] sm:$0xff]
    %v187 = vld [vmem:[%s179 + $0x70] sm:$0xff]
    %v188 = vperm.slane %v22, 6
    %v189 = vmul.f32 %v180, %v188
    %v190 = vmul.f32 %v181, %v188
    %v191 = vmul.f32 %v182, %v188
    %v192 = vmul.f32 %v183, %v188
    %v193 = vmul.f32 %v184, %v188
    %v194 = vmul.f32 %v185, %v188
    %v195 = vmul.f32 %v186, %v188
    %v196 = vmul.f32 %v187, %v188
    %v197 = vadd.f32 %v169, %v189
    %v198 = vadd.f32 %v170, %v190
    %v199 = vadd.f32 %v171, %v191
    %v200 = vadd.f32 %v172, %v192
    %v201 = vadd.f32 %v173, %v193
    %v202 = vadd.f32 %v174, %v194
    %v203 = vadd.f32 %v175, %v195
    %v204 = vadd.f32 %v176, %v196
    %s205 = sadd.s32 %s178, 144
    %s206 = scalar_lea.vmem %s0, %s205
    %v207 = vld [vmem:[%s206] sm:$0xff]
    %v208 = vld [vmem:[%s206 + $0x10] sm:$0xff]
    %v209 = vld [vmem:[%s206 + $0x20] sm:$0xff]
    %v210 = vld [vmem:[%s206 + $0x30] sm:$0xff]
    %v211 = vld [vmem:[%s206 + $0x40] sm:$0xff]
    %v212 = vld [vmem:[%s206 + $0x50] sm:$0xff]
    %v213 = vld [vmem:[%s206 + $0x60] sm:$0xff]
    %v214 = vld [vmem:[%s206 + $0x70] sm:$0xff]
    %v215 = vperm.slane %v22, 7
    %v216 = vmul.f32 %v207, %v215
    %v217 = vmul.f32 %v208, %v215
    %v218 = vmul.f32 %v209, %v215
    %v219 = vmul.f32 %v210, %v215
    %v220 = vmul.f32 %v211, %v215
    %v221 = vmul.f32 %v212, %v215
    %v222 = vmul.f32 %v213, %v215
    %v223 = vmul.f32 %v214, %v215
    %v224 = vadd.f32 %v197, %v216
    %v225 = vadd.f32 %v198, %v217
    %v226 = vadd.f32 %v199, %v218
    %v227 = vadd.f32 %v200, %v219
    %v228 = vadd.f32 %v201, %v220
    %v229 = vadd.f32 %v202, %v221
    %v230 = vadd.f32 %v203, %v222
    %v231 = vadd.f32 %v204, %v223
    %v232 = vld [vmem:[%s179 + $0x1] sm:$0xff]
    %v233 = vld [vmem:[%s179 + $0x11] sm:$0xff]
    %v234 = vld [vmem:[%s179 + $0x21] sm:$0xff]
    %v235 = vld [vmem:[%s179 + $0x31] sm:$0xff]
    %v236 = vld [vmem:[%s179 + $0x41] sm:$0xff]
    %v237 = vld [vmem:[%s179 + $0x51] sm:$0xff]
    %v238 = vld [vmem:[%s179 + $0x61] sm:$0xff]
    %v239 = vld [vmem:[%s179 + $0x71] sm:$0xff]
    %v240 = vperm.slane %v23, 0
    %v241 = vmul.f32 %v232, %v240
    %v242 = vmul.f32 %v233, %v240
    %v243 = vmul.f32 %v234, %v240
    %v244 = vmul.f32 %v235, %v240
    %v245 = vmul.f32 %v236, %v240
    %v246 = vmul.f32 %v237, %v240
    %v247 = vmul.f32 %v238, %v240
    %v248 = vmul.f32 %v239, %v240
    %v249 = vadd.f32 %v224, %v241
    %v250 = vadd.f32 %v225, %v242
    %v251 = vadd.f32 %v226, %v243
    %v252 = vadd.f32 %v227, %v244
    %v253 = vadd.f32 %v228, %v245
    %v254 = vadd.f32 %v229, %v246
    %v255 = vadd.f32 %v230, %v247
    %v256 = vadd.f32 %v231, %v248
    %v258 = vperm.slane %v25, 0
    %v260 = vadd.f32 %v249, %v258
    %v261 = vadd.f32 %v250, %v258
    %v262 = vadd.f32 %v251, %v258
    %v263 = vadd.f32 %v252, %v258
    %v264 = vadd.f32 %v253, %v258
    %v265 = vadd.f32 %v254, %v258
    %v266 = vadd.f32 %v255, %v258
    %v267 = vadd.f32 %v256, %v258
    %v268 = vmax.f32 %v260, 0.0
    %v269 = vmax.f32 %v261, 0.0
    %v270 = vmax.f32 %v262, 0.0
    %v271 = vmax.f32 %v263, 0.0
    %v272 = vmax.f32 %v264, 0.0
    %v273 = vmax.f32 %v265, 0.0
    %v274 = vmax.f32 %v266, 0.0
    %v275 = vmax.f32 %v267, 0.0
    %v277 = vperm.slane %v26, 0
    %vm279 = vcmask 31744
    %v281 = vsel %vm279, %v268, 0
    %v284 = vsel %vm279, %v269, 0
    %v287 = vsel %vm279, %v270, 0
    %v290 = vsel %vm279, %v271, 0
    %v293 = vsel %vm279, %v272, 0
    %v296 = vsel %vm279, %v273, 0
    %v299 = vsel %vm279, %v274, 0
    %v302 = vsel %vm279, %v275, 0
    %vm304 = vcmask 1043456
    %v306 = vsel %vm304, %v24, 0
    %308 = vmatpush.msra.mxu0 0.0
    %309 = vmatpush.msra.mxu0 0.0
    %310 = vmatpush.msra.mxu0 0.0
    %311 = vmatpush.msra.mxu0 0.0
    %312 = vmatpush.msra.mxu0 0.0
    %313 = vmatpush.msra.mxu0 0.0
    %314 = vmatpush.msra.mxu0 0.0
    %315 = vmatpush.msra.mxu0 0.0
    %316 = vmatpush.msra.mxu0 0.0
    %317 = vmatpush.msra.mxu0 0.0
    %318 = vmatpush.msra.mxu0 0.0
    %319 = vmatpush.msra.mxu0 0.0
    %320 = vmatpush.msra.mxu0 0.0
    %321 = vmatpush.msra.mxu0 0.0
    %322 = vmatpush.msra.mxu0 0.0
    %323 = vmatpush.msra.mxu0 %v306
    %324 = vmatmul.f32.gmra.mxu0 %v281
    %v325 = vpop.f32.mrf.mxu0
    %v326 = vadd.f32 %v277, %v325
    %327 = vmatmul.f32.gmra.mxu0 %v284
    %v328 = vpop.f32.mrf.mxu0
    %v329 = vadd.f32 %v277, %v328
    %330 = vmatmul.f32.gmra.mxu0 %v287
    %v331 = vpop.f32.mrf.mxu0
    %v332 = vadd.f32 %v277, %v331
    %333 = vmatmul.f32.gmra.mxu0 %v290
    %v334 = vpop.f32.mrf.mxu0
    %v335 = vadd.f32 %v277, %v334
    %336 = vmatmul.f32.gmra.mxu0 %v293
    %v337 = vpop.f32.mrf.mxu0
    %v338 = vadd.f32 %v277, %v337
    %339 = vmatmul.f32.gmra.mxu0 %v296
    %v340 = vpop.f32.mrf.mxu0
    %v341 = vadd.f32 %v277, %v340
    %342 = vmatmul.f32.gmra.mxu0 %v299
    %v343 = vpop.f32.mrf.mxu0
    %v344 = vadd.f32 %v277, %v343
    %345 = vmatmul.f32.gmra.mxu0 %v302
    %v346 = vpop.f32.mrf.mxu0
    %v347 = vadd.f32 %v277, %v346
    %348 = vdwg.mxu0
    %v349 = vmax.f32 %v326, 0.0
    %v350 = vmax.f32 %v329, 0.0
    %v351 = vmax.f32 %v332, 0.0
    %v352 = vmax.f32 %v335, 0.0
    %v353 = vmax.f32 %v338, 0.0
    %v354 = vmax.f32 %v341, 0.0
    %v355 = vmax.f32 %v344, 0.0
    %v356 = vmax.f32 %v347, 0.0
    %357 = vst [vmem:[#allocation2] sm:$0xff] %v349
    %358 = vst [vmem:[#allocation2 + $0x8] sm:$0xff] %v350
    %359 = vst [vmem:[#allocation2 + $0x10] sm:$0xff] %v351
    %360 = vst [vmem:[#allocation2 + $0x18] sm:$0xff] %v352
    %361 = vst [vmem:[#allocation2 + $0x20] sm:$0xff] %v353
    %362 = vst [vmem:[#allocation2 + $0x28] sm:$0xff] %v354
    %363 = vst [vmem:[#allocation2 + $0x30] sm:$0xff] %v355
    %364 = vst [vmem:[#allocation2 + $0x38] sm:$0xff] %v356
    %s365 = sadd.s32 %s27, 576
    %s366 = scalar_lea.vmem %s0, %s365
    %v367 = vld [vmem:[%s366] sm:$0xff]
    %v368 = vld [vmem:[%s366 + $0x10] sm:$0xff]
    %v369 = vld [vmem:[%s366 + $0x20] sm:$0xff]
    %v370 = vld [vmem:[%s366 + $0x30] sm:$0xff]
    %v371 = vld [vmem:[%s366 + $0x40] sm:$0xff]
    %v372 = vld [vmem:[%s366 + $0x50] sm:$0xff]
    %v373 = vld [vmem:[%s366 + $0x60] sm:$0xff]
    %v374 = vld [vmem:[%s366 + $0x70] sm:$0xff]
    %v375 = vmul.f32 %v367, %v37
    %v376 = vmul.f32 %v368, %v37
    %v377 = vmul.f32 %v369, %v37
    %v378 = vmul.f32 %v370, %v37
    %v379 = vmul.f32 %v371, %v37
    %v380 = vmul.f32 %v372, %v37
    %v381 = vmul.f32 %v373, %v37
    %v382 = vmul.f32 %v374, %v37
    %s383 = sadd.s32 %s46, 576
    %s384 = scalar_lea.vmem %s0, %s383
    %v385 = vld [vmem:[%s384] sm:$0xff]
    %v386 = vld [vmem:[%s384 + $0x10] sm:$0xff]
    %v387 = vld [vmem:[%s384 + $0x20] sm:$0xff]
    %v388 = vld [vmem:[%s384 + $0x30] sm:$0xff]
    %v389 = vld [vmem:[%s384 + $0x40] sm:$0xff]
    %v390 = vld [vmem:[%s384 + $0x50] sm:$0xff]
    %v391 = vld [vmem:[%s384 + $0x60] sm:$0xff]
    %v392 = vld [vmem:[%s384 + $0x70] sm:$0xff]
    %v393 = vmul.f32 %v385, %v56
    %v394 = vmul.f32 %v386, %v56
    %v395 = vmul.f32 %v387, %v56
    %v396 = vmul.f32 %v388, %v56
    %v397 = vmul.f32 %v389, %v56
    %v398 = vmul.f32 %v390, %v56
    %v399 = vmul.f32 %v391, %v56
    %v400 = vmul.f32 %v392, %v56
    %v401 = vadd.f32 %v375, %v393
    %v402 = vadd.f32 %v376, %v394
    %v403 = vadd.f32 %v377, %v395
    %v404 = vadd.f32 %v378, %v396
    %v405 = vadd.f32 %v379, %v397
    %v406 = vadd.f32 %v380, %v398
    %v407 = vadd.f32 %v381, %v399
    %v408 = vadd.f32 %v382, %v400
    %v409 = vld [vmem:[%s366 + $0x1] sm:$0xff]
    %v410 = vld [vmem:[%s366 + $0x11] sm:$0xff]
    %v411 = vld [vmem:[%s366 + $0x21] sm:$0xff]
    %v412 = vld [vmem:[%s366 + $0x31] sm:$0xff]
    %v413 = vld [vmem:[%s366 + $0x41] sm:$0xff]
    %v414 = vld [vmem:[%s366 + $0x51] sm:$0xff]
    %v415 = vld [vmem:[%s366 + $0x61] sm:$0xff]
    %v416 = vld [vmem:[%s366 + $0x71] sm:$0xff]
    %v417 = vmul.f32 %v409, %v81
    %v418 = vmul.f32 %v410, %v81
    %v419 = vmul.f32 %v411, %v81
    %v420 = vmul.f32 %v412, %v81
    %v421 = vmul.f32 %v413, %v81
    %v422 = vmul.f32 %v414, %v81
    %v423 = vmul.f32 %v415, %v81
    %v424 = vmul.f32 %v416, %v81
    %v425 = vadd.f32 %v401, %v417
    %v426 = vadd.f32 %v402, %v418
    %v427 = vadd.f32 %v403, %v419
    %v428 = vadd.f32 %v404, %v420
    %v429 = vadd.f32 %v405, %v421
    %v430 = vadd.f32 %v406, %v422
    %v431 = vadd.f32 %v407, %v423
    %v432 = vadd.f32 %v408, %v424
    %s433 = sadd.s32 %s98, 576
    %s434 = scalar_lea.vmem %s0, %s433
    %v435 = vld [vmem:[%s434] sm:$0xff]
    %v436 = vld [vmem:[%s434 + $0x10] sm:$0xff]
    %v437 = vld [vmem:[%s434 + $0x20] sm:$0xff]
    %v438 = vld [vmem:[%s434 + $0x30] sm:$0xff]
    %v439 = vld [vmem:[%s434 + $0x40] sm:$0xff]
    %v440 = vld [vmem:[%s434 + $0x50] sm:$0xff]
    %v441 = vld [vmem:[%s434 + $0x60] sm:$0xff]
    %v442 = vld [vmem:[%s434 + $0x70] sm:$0xff]
    %v443 = vmul.f32 %v435, %v108
    %v444 = vmul.f32 %v436, %v108
    %v445 = vmul.f32 %v437, %v108
    %v446 = vmul.f32 %v438, %v108
    %v447 = vmul.f32 %v439, %v108
    %v448 = vmul.f32 %v440, %v108
    %v449 = vmul.f32 %v441, %v108
    %v450 = vmul.f32 %v442, %v108
    %v451 = vadd.f32 %v425, %v443
    %v452 = vadd.f32 %v426, %v444
    %v453 = vadd.f32 %v427, %v445
    %v454 = vadd.f32 %v428, %v446
    %v455 = vadd.f32 %v429, %v447
    %v456 = vadd.f32 %v430, %v448
    %v457 = vadd.f32 %v431, %v449
    %v458 = vadd.f32 %v432, %v450
    %s459 = sadd.s32 %s125, 576
    %s460 = scalar_lea.vmem %s0, %s459
    %v461 = vld [vmem:[%s460] sm:$0xff]
    %v462 = vld [vmem:[%s460 + $0x10] sm:$0xff]
    %v463 = vld [vmem:[%s460 + $0x20] sm:$0xff]
    %v464 = vld [vmem:[%s460 + $0x30] sm:$0xff]
    %v465 = vld [vmem:[%s460 + $0x40] sm:$0xff]
    %v466 = vld [vmem:[%s460 + $0x50] sm:$0xff]
    %v467 = vld [vmem:[%s460 + $0x60] sm:$0xff]
    %v468 = vld [vmem:[%s460 + $0x70] sm:$0xff]
    %v469 = vmul.f32 %v461, %v135
    %v470 = vmul.f32 %v462, %v135
    %v471 = vmul.f32 %v463, %v135
    %v472 = vmul.f32 %v464, %v135
    %v473 = vmul.f32 %v465, %v135
    %v474 = vmul.f32 %v466, %v135
    %v475 = vmul.f32 %v467, %v135
    %v476 = vmul.f32 %v468, %v135
    %v477 = vadd.f32 %v451, %v469
    %v478 = vadd.f32 %v452, %v470
    %v479 = vadd.f32 %v453, %v471
    %v480 = vadd.f32 %v454, %v472
    %v481 = vadd.f32 %v455, %v473
    %v482 = vadd.f32 %v456, %v474
    %v483 = vadd.f32 %v457, %v475
    %v484 = vadd.f32 %v458, %v476
    %v485 = vld [vmem:[%s434 + $0x1] sm:$0xff]
    %v486 = vld [vmem:[%s434 + $0x11] sm:$0xff]
    %v487 = vld [vmem:[%s434 + $0x21] sm:$0xff]
    %v488 = vld [vmem:[%s434 + $0x31] sm:$0xff]
    %v489 = vld [vmem:[%s434 + $0x41] sm:$0xff]
    %v490 = vld [vmem:[%s434 + $0x51] sm:$0xff]
    %v491 = vld [vmem:[%s434 + $0x61] sm:$0xff]
    %v492 = vld [vmem:[%s434 + $0x71] sm:$0xff]
    %v493 = vmul.f32 %v485, %v160
    %v494 = vmul.f32 %v486, %v160
    %v495 = vmul.f32 %v487, %v160
    %v496 = vmul.f32 %v488, %v160
    %v497 = vmul.f32 %v489, %v160
    %v498 = vmul.f32 %v490, %v160
    %v499 = vmul.f32 %v491, %v160
    %v500 = vmul.f32 %v492, %v160
    %v501 = vadd.f32 %v477, %v493
    %v502 = vadd.f32 %v478, %v494
    %v503 = vadd.f32 %v479, %v495
    %v504 = vadd.f32 %v480, %v496
    %v505 = vadd.f32 %v481, %v497
    %v506 = vadd.f32 %v482, %v498
    %v507 = vadd.f32 %v483, %v499
    %v508 = vadd.f32 %v484, %v500
    %s509 = sadd.s32 %s178, 576
    %s510 = scalar_lea.vmem %s0, %s509
    %v511 = vld [vmem:[%s510] sm:$0xff]
    %v512 = vld [vmem:[%s510 + $0x10] sm:$0xff]
    %v513 = vld [vmem:[%s510 + $0x20] sm:$0xff]
    %v514 = vld [vmem:[%s510 + $0x30] sm:$0xff]
    %v515 = vld [vmem:[%s510 + $0x40] sm:$0xff]
    %v516 = vld [vmem:[%s510 + $0x50] sm:$0xff]
    %v517 = vld [vmem:[%s510 + $0x60] sm:$0xff]
    %v518 = vld [vmem:[%s510 + $0x70] sm:$0xff]
    %v519 = vmul.f32 %v511, %v188
    %v520 = vmul.f32 %v512, %v188
    %v521 = vmul.f32 %v513, %v188
    %v522 = vmul.f32 %v514, %v188
    %v523 = vmul.f32 %v515, %v188
    %v524 = vmul.f32 %v516, %v188
    %v525 = vmul.f32 %v517, %v188
    %v526 = vmul.f32 %v518, %v188
    %v527 = vadd.f32 %v501, %v519
    %v528 = vadd.f32 %v502, %v520
    %v529 = vadd.f32 %v503, %v521
    %v530 = vadd.f32 %v504, %v522
    %v531 = vadd.f32 %v505, %v523
    %v532 = vadd.f32 %v506, %v524
    %v533 = vadd.f32 %v507, %v525
    %v534 = vadd.f32 %v508, %v526
    %s535 = sadd.s32 %s205, 576
    %s536 = scalar_lea.vmem %s0, %s535
    %v537 = vld [vmem:[%s536] sm:$0xff]
    %v538 = vld [vmem:[%s536 + $0x10] sm:$0xff]
    %v539 = vld [vmem:[%s536 + $0x20] sm:$0xff]
    %v540 = vld [vmem:[%s536 + $0x30] sm:$0xff]
    %v541 = vld [vmem:[%s536 + $0x40] sm:$0xff]
    %v542 = vld [vmem:[%s536 + $0x50] sm:$0xff]
    %v543 = vld [vmem:[%s536 + $0x60] sm:$0xff]
    %v544 = vld [vmem:[%s536 + $0x70] sm:$0xff]
    %v545 = vmul.f32 %v537, %v215
    %v546 = vmul.f32 %v538, %v215
    %v547 = vmul.f32 %v539, %v215
    %v548 = vmul.f32 %v540, %v215
    %v549 = vmul.f32 %v541, %v215
    %v550 = vmul.f32 %v542, %v215
    %v551 = vmul.f32 %v543, %v215
    %v552 = vmul.f32 %v544, %v215
    %v553 = vadd.f32 %v527, %v545
    %v554 = vadd.f32 %v528, %v546
    %v555 = vadd.f32 %v529, %v547
    %v556 = vadd.f32 %v530, %v548
    %v557 = vadd.f32 %v531, %v549
    %v558 = vadd.f32 %v532, %v550
    %v559 = vadd.f32 %v533, %v551
    %v560 = vadd.f32 %v534, %v552
    %v561 = vld [vmem:[%s510 + $0x1] sm:$0xff]
    %v562 = vld [vmem:[%s510 + $0x11] sm:$0xff]
    %v563 = vld [vmem:[%s510 + $0x21] sm:$0xff]
    %v564 = vld [vmem:[%s510 + $0x31] sm:$0xff]
    %v565 = vld [vmem:[%s510 + $0x41] sm:$0xff]
    %v566 = vld [vmem:[%s510 + $0x51] sm:$0xff]
    %v567 = vld [vmem:[%s510 + $0x61] sm:$0xff]
    %v568 = vld [vmem:[%s510 + $0x71] sm:$0xff]
    %v569 = vmul.f32 %v561, %v240
    %v570 = vmul.f32 %v562, %v240
    %v571 = vmul.f32 %v563, %v240
    %v572 = vmul.f32 %v564, %v240
    %v573 = vmul.f32 %v565, %v240
    %v574 = vmul.f32 %v566, %v240
    %v575 = vmul.f32 %v567, %v240
    %v576 = vmul.f32 %v568, %v240
    %v577 = vadd.f32 %v553, %v569
    %v578 = vadd.f32 %v554, %v570
    %v579 = vadd.f32 %v555, %v571
    %v580 = vadd.f32 %v556, %v572
    %v581 = vadd.f32 %v557, %v573
    %v582 = vadd.f32 %v558, %v574
    %v583 = vadd.f32 %v559, %v575
    %v584 = vadd.f32 %v560, %v576
    %v585 = vadd.f32 %v577, %v258
    %v586 = vadd.f32 %v578, %v258
    %v587 = vadd.f32 %v579, %v258
    %v588 = vadd.f32 %v580, %v258
    %v589 = vadd.f32 %v581, %v258
    %v590 = vadd.f32 %v582, %v258
    %v591 = vadd.f32 %v583, %v258
    %v592 = vadd.f32 %v584, %v258
    %v593 = vmax.f32 %v585, 0.0
    %v594 = vmax.f32 %v586, 0.0
    %v595 = vmax.f32 %v587, 0.0
    %v596 = vmax.f32 %v588, 0.0
    %v597 = vmax.f32 %v589, 0.0
    %v598 = vmax.f32 %v590, 0.0
    %v599 = vmax.f32 %v591, 0.0
    %v600 = vmax.f32 %v592, 0.0
    %v602 = vsel %vm279, %v593, 0
    %v605 = vsel %vm279, %v594, 0
    %v608 = vsel %vm279, %v595, 0
    %v611 = vsel %vm279, %v596, 0
    %v614 = vsel %vm279, %v597, 0
    %v617 = vsel %vm279, %v598, 0
    %v620 = vsel %vm279, %v599, 0
    %v623 = vsel %vm279, %v600, 0
    %625 = vmatpush.msra.mxu0 0.0
    %626 = vmatpush.msra.mxu0 0.0
    %627 = vmatpush.msra.mxu0 0.0
    %628 = vmatpush.msra.mxu0 0.0
    %629 = vmatpush.msra.mxu0 0.0
    %630 = vmatpush.msra.mxu0 0.0
    %631 = vmatpush.msra.mxu0 0.0
    %632 = vmatpush.msra.mxu0 0.0
    %633 = vmatpush.msra.mxu0 0.0
    %634 = vmatpush.msra.mxu0 0.0
    %635 = vmatpush.msra.mxu0 0.0
    %636 = vmatpush.msra.mxu0 0.0
    %637 = vmatpush.msra.mxu0 0.0
    %638 = vmatpush.msra.mxu0 0.0
    %639 = vmatpush.msra.mxu0 0.0
    %640 = vmatpush.msra.mxu0 %v306
    %641 = vmatmul.f32.gmra.mxu0 %v602
    %v642 = vpop.f32.mrf.mxu0
    %v643 = vadd.f32 %v277, %v642
    %644 = vmatmul.f32.gmra.mxu0 %v605
    %v645 = vpop.f32.mrf.mxu0
    %v646 = vadd.f32 %v277, %v645
    %647 = vmatmul.f32.gmra.mxu0 %v608
    %v648 = vpop.f32.mrf.mxu0
    %v649 = vadd.f32 %v277, %v648
    %650 = vmatmul.f32.gmra.mxu0 %v611
    %v651 = vpop.f32.mrf.mxu0
    %v652 = vadd.f32 %v277, %v651
    %653 = vmatmul.f32.gmra.mxu0 %v614
    %v654 = vpop.f32.mrf.mxu0
    %v655 = vadd.f32 %v277, %v654
    %656 = vmatmul.f32.gmra.mxu0 %v617
    %v657 = vpop.f32.mrf.mxu0
    %v658 = vadd.f32 %v277, %v657
    %659 = vmatmul.f32.gmra.mxu0 %v620
    %v660 = vpop.f32.mrf.mxu0
    %v661 = vadd.f32 %v277, %v660
    %662 = vmatmul.f32.gmra.mxu0 %v623
    %v663 = vpop.f32.mrf.mxu0
    %v664 = vadd.f32 %v277, %v663
    %665 = vdwg.mxu0
    %v666 = vmax.f32 %v643, 0.0
    %v667 = vmax.f32 %v646, 0.0
    %v668 = vmax.f32 %v649, 0.0
    %v669 = vmax.f32 %v652, 0.0
    %v670 = vmax.f32 %v655, 0.0
    %v671 = vmax.f32 %v658, 0.0
    %v672 = vmax.f32 %v661, 0.0
    %v673 = vmax.f32 %v664, 0.0
    %s674 = scalar_lea.vmem [#allocation2], 64
    %675 = vst [vmem:[%s674] sm:$0xff] %v666
    %676 = vst [vmem:[%s674 + $0x8] sm:$0xff] %v667
    %677 = vst [vmem:[%s674 + $0x10] sm:$0xff] %v668
    %678 = vst [vmem:[%s674 + $0x18] sm:$0xff] %v669
    %679 = vst [vmem:[%s674 + $0x20] sm:$0xff] %v670
    %680 = vst [vmem:[%s674 + $0x28] sm:$0xff] %v671
    %681 = vst [vmem:[%s674 + $0x30] sm:$0xff] %v672
    %682 = vst [vmem:[%s674 + $0x38] sm:$0xff] %v673
    // Predicated region
    $region22: #{tpu_custom_call.1} parent=1 // pred_check
      _
    $region23: #{tpu_custom_call.1} parent=1 // pred_check_branch
      %684 = sbr.rel (0) target = $region25
    $region24: #{tpu_custom_call.1} parent=1 // pred_region
      %686 = vsyncadd [#allocation3], 0
      %s687 = sshll.u32 [#allocation2], 4
      %s688 = int_to_ptr.vmem [resolvable:$true] %s687
      %s689 = sshll.u32 %s5, 4
      %s690 = int_to_ptr.hbm [resolvable:$true] %s689
      %695 = dma.vmem_to_hbm [thread:$0]  %s688, 2048, %s690, [#allocation3], 128, 128, 8
    $region25: #{tpu_custom_call.1} parent=1 // pred_fallthru
      _
    // Predicated region
    $region26: #{tpu_custom_call.1} parent=1 // pred_check
      _
    $region27: #{tpu_custom_call.1} parent=1 // pred_check_branch
      %697 = sbr.rel (0) target = $region29
    $region28: #{tpu_custom_call.1} parent=1 // pred_region
      %699 = dma.done [#allocation3], 2048
    $region29: #{tpu_custom_call.1} parent=1 // pred_fallthru
      _
    %700 = vsyncpa [#allocation3], 1

</llo_original>
